<compile_context>
chip_gen: v7x
topology: tpu7x:2x2x1
jax: 0.10.0
libtpu: 0.0.40
codegen_flags: <defaults>
</compile_context>

<pallas_src>
import jax
import jax.numpy as jnp
from jax.experimental import pallas as pl
from jax.experimental.pallas import tpu as pltpu


def _leaky_relu(x, slope=0.1):
    # Identical to where(x>=0, x, slope*x) for 0 < slope < 1, one fewer VALU op.
    return jnp.maximum(x, slope * x)


def _make_kernel(act_dtype):
    def kernel(p_ref,
               w0_ref, b0_ref,
               w1_ref, b1_ref,
               w2_ref, b2_ref,
               w3_ref, b3_ref,
               w45_ref, b45_ref,
               out_ref):
        # p_ref:  [blk*64, 48] bf16 patch rows for `blk` images
        # out_ref: [blk, 128] f32 (only first 3 lanes are real logits)
        blk = out_ref.shape[0]

        # Conv2d(3,128,4,4) as patch matmul (bf16 MXU, f32 acc) + LeakyReLU.
        h = jnp.dot(p_ref[...], w0_ref[...], preferred_element_type=jnp.float32)
        h = _leaky_relu((h + b0_ref[...]).astype(act_dtype))

        # First two Conv2d(128,128,1) + LeakyReLU (activation in act_dtype,
        # which already is the dtype fed to the next MXU pass).
        for w_ref, b_ref in ((w1_ref, b1_ref), (w2_ref, b2_ref)):
            h = jnp.dot(h.astype(jnp.bfloat16), w_ref[...],
                        preferred_element_type=jnp.float32)
            h = _leaky_relu((h + b_ref[...]).astype(act_dtype))

        # Third Conv2d(128,128,1) + LeakyReLU: keep this activation in f32
        # because it feeds the 64-way pooling sum (precision), not a bf16 dot.
        h = jnp.dot(h.astype(jnp.bfloat16), w3_ref[...],
                    preferred_element_type=jnp.float32)
        h = _leaky_relu(h + b3_ref[...])                    # [blk*64, 128] f32

        # Fused Conv2d(128,32,1) + AvgPool2d(8) + Linear(32,3):
        # sum over the 64 positions, then one tiny [128,128] matmul
        # (1/64 pooling scale already folded into w45).
        pooled = jnp.sum(h.reshape(blk, 64, 128), axis=1)   # [blk, 128] f32
        out_ref[...] = (jnp.dot(pooled, w45_ref[...],
                                preferred_element_type=jnp.float32)
                        + b45_ref[...])
    return kernel


def extract_patches_nchw(x, out_dtype=None):
    """x: [N, 3, H, W] NCHW -> patch rows [N*(H//4)*(W//4), 3*4*4]."""
    N, C, H, W = x.shape
    if out_dtype is not None:
        x = x.astype(out_dtype)           # cast BEFORE the relayout pass
    x = x.reshape(N, C, H // 4, 4, W // 4, 4)
    x = jnp.transpose(x, (0, 2, 4, 1, 3, 5))   # [N, H/4, W/4, C, 4, 4]
    return x.reshape(N * (H // 4) * (W // 4), C * 16)


def _device_tuning(n):
    """Pick (block_imgs, vmem_limit_bytes, activation dtype) per TPU generation."""
    try:
        kind = jax.devices()[0].device_kind.lower()
    except Exception:
        kind = ""
    if "v5" in kind:
        # 128 MiB VMEM; no bf16 VALU -> keep activations f32; big blocks.
        target, vmem, act_dtype = 256, 64 << 20, jnp.float32
    elif "v6" in kind:
        # 128 MiB VMEM; bf16 VALU available.
        target, vmem, act_dtype = 128, 64 << 20, jnp.bfloat16
    else:
        # v7x (or unknown): 64 MiB VMEM/TC, 2 TensorCores -> modest blocks and
        # try to give the "parallel" grid axis >= 2 steps.
        target, vmem, act_dtype = 64, 40 << 20, jnp.bfloat16
        if 8 < n <= target:
            target = max(8, (((n + 1) // 2) + 7) // 8 * 8)
    blk = min(target, n)
    if blk < n:
        blk = max(8, (blk // 8) * 8)   # (8,128) sublane rule for non-full blocks
    return blk, vmem, act_dtype


def classifier_forward(x_nchw, params, block_imgs=None):
    """x_nchw: [N, 3, 32, 32] float32 -> logits [N, 3] float32."""
    N = x_nchw.shape[0]
    blk, vmem_limit, act_dtype = _device_tuning(N)
    if block_imgs is not None:
        blk = min(int(block_imgs), N)
        if blk < N:
            blk = max(8, (blk // 8) * 8)
    n_pad = ((N + blk - 1) // blk) * blk
    rows_pad = n_pad * 64

    # Fold batch padding into the im2col producer (single fused pass).
    if n_pad != N:
        x_nchw = jnp.pad(x_nchw, ((0, n_pad - N), (0, 0), (0, 0), (0, 0)))
    p2d = extract_patches_nchw(x_nchw, jnp.bfloat16)        # [rows_pad, 48] bf16

    # bf16 matmul weights; biases stay f32.
    w0 = params["w0"].astype(jnp.bfloat16)
    w1 = params["w1"].astype(jnp.bfloat16)
    w2 = params["w2"].astype(jnp.bfloat16)
    w3 = params["w3"].astype(jnp.bfloat16)
    b0, b1, b2, b3 = params["b0"], params["b1"], params["b2"], params["b3"]

    # Exact fusion of Conv2d(128,32,1) + AvgPool2d(8) + Linear(32,3):
    # W45 = (w4 @ w5_padded) / 64, b45 = b4 @ w5_padded + b5_padded.
    # Output lanes padded to 128 for an unmasked lane-dense store.
    w5p = jnp.zeros((32, 128), jnp.float32).at[:, :3].set(params["w5"])
    b5p = jnp.zeros((1, 128), jnp.float32).at[:, :3].set(params["b5"])
    w45 = (params["w4"] @ w5p) * (1.0 / 64.0)               # [128, 128] f32
    b45 = params["b4"] @ w5p + b5p                          # [1, 128]   f32

    weight_args = (w0, b0, w1, b1, w2, b2, w3, b3, w45, b45)

    def resident(arr):
        # Constant index_map: weight/bias tile stays resident across the grid.
        return pl.BlockSpec(arr.shape, lambda i: (0, 0))

    in_specs = [pl.BlockSpec((blk * 64, 48), lambda i: (i, 0))]
    in_specs += [resident(a) for a in weight_args]
    out_spec = pl.BlockSpec((blk, 128), lambda i: (i, 0))

    flops = 2 * rows_pad * (48 * 128 + 3 * 128 * 128) + 2 * n_pad * 128 * 128
    bytes_accessed = (p2d.size * p2d.dtype.itemsize
                      + sum(int(a.size) * a.dtype.itemsize for a in weight_args)
                      + n_pad * 128 * 4)
    cost = pl.CostEstimate(flops=int(flops), transcendentals=0,
                           bytes_accessed=int(bytes_accessed))

    out_pad = pl.pallas_call(
        _make_kernel(act_dtype),
        out_shape=jax.ShapeDtypeStruct((n_pad, 128), jnp.float32),
        grid=(n_pad // blk,),
        in_specs=in_specs,
        out_specs=out_spec,
        compiler_params=pltpu.CompilerParams(
            dimension_semantics=("parallel",),
            vmem_limit_bytes=int(vmem_limit)),
        cost_estimate=cost,
    )(p2d, *weight_args)

    return out_pad[:N, :3]


def init_params(key):
    """Deterministic synthetic parameters matching the torch module shapes.

    torch shapes: conv0 [128,3,4,4], conv1..3 [128,128,1,1], conv4 [32,128,1,1],
    linear [3,32]. Stored pre-transposed for right-multiplication; biases as
    [1, C] rows. Kept in f32; the wrapper casts matmul weights to bf16.
    """
    ks = jax.random.split(key, 12)

    def w(k, shape, fan_in, scale=0.1):
        return (scale * jax.random.normal(k, shape, jnp.float32)
                / jnp.sqrt(jnp.float32(fan_in)))

    conv0 = w(ks[0], (128, 3, 4, 4), 3 * 16)
    conv1 = w(ks[1], (128, 128, 1, 1), 128)
    conv2 = w(ks[2], (128, 128, 1, 1), 128)
    conv3 = w(ks[3], (128, 128, 1, 1), 128)
    conv4 = w(ks[4], (32, 128, 1, 1), 128)
    lin = w(ks[5], (3, 32), 32, scale=1.0)

    return dict(
        w0=conv0.reshape(128, 48).T,                       # [48, 128]
        b0=0.01 * jax.random.normal(ks[6], (1, 128), jnp.float32),
        w1=conv1.reshape(128, 128).T,                      # [128, 128]
        b1=0.01 * jax.random.normal(ks[7], (1, 128), jnp.float32),
        w2=conv2.reshape(128, 128).T,
        b2=0.01 * jax.random.normal(ks[8], (1, 128), jnp.float32),
        w3=conv3.reshape(128, 128).T,
        b3=0.01 * jax.random.normal(ks[9], (1, 128), jnp.float32),
        w4=conv4.reshape(32, 128).T,                       # [128, 32]
        b4=0.01 * jax.random.normal(ks[10], (1, 32), jnp.float32),
        w5=lin.T,                                          # [32, 3]
        b5=0.01 * jax.random.normal(ks[11], (1, 3), jnp.float32),
    )


def reference_forward(x_nchw, params):
    """Pure-JAX f32 reference reproducing the torch forward semantics (unfused)."""
    N = x_nchw.shape[0]
    h = extract_patches_nchw(x_nchw)                       # [N*64, 48] f32
    h = _leaky_relu(h @ params["w0"] + params["b0"])
    h = _leaky_relu(h @ params["w1"] + params["b1"])
    h = _leaky_relu(h @ params["w2"] + params["b2"])
    h = _leaky_relu(h @ params["w3"] + params["b3"])
    h = h @ params["w4"] + params["b4"]                    # [N*64, 32]
    pooled = jnp.mean(h.reshape(N, 64, 32), axis=1)        # AvgPool2d(8)+view
    return pooled @ params["w5"] + params["b5"]            # Linear(32, 3)


if __name__ == "__main__":
    key = jax.random.PRNGKey(0)
    kx, kp = jax.random.split(key)

    # Input consistent with the module: NCHW [N, 3, 32, 32]
    x = jax.random.normal(kx, (2, 3, 32, 32), jnp.float32)
    params = init_params(kp)

    out = classifier_forward(x, params)
    out = jax.block_until_ready(out)

    ref = reference_forward(x, params)
    assert out.shape == (2, 3)
    # bf16 matmuls/activations vs f32 reference: loose tolerance.
    assert jnp.allclose(out, ref, atol=2e-2, rtol=2e-2), (out, ref)

    print("KERNEL_OK")
</pallas_src>

<mosaic_0001>
module attributes {stable_mosaic.version = 11 : i64} {
  func.func @kernel(%arg0: i32, %arg1: memref<128x48xbf16, #tpu.memory_space<vmem>>, %arg2: memref<48x128xbf16, #tpu.memory_space<vmem>>, %arg3: memref<1x128xf32, #tpu.memory_space<vmem>>, %arg4: memref<128x128xbf16, #tpu.memory_space<vmem>>, %arg5: memref<1x128xf32, #tpu.memory_space<vmem>>, %arg6: memref<128x128xbf16, #tpu.memory_space<vmem>>, %arg7: memref<1x128xf32, #tpu.memory_space<vmem>>, %arg8: memref<128x128xbf16, #tpu.memory_space<vmem>>, %arg9: memref<1x128xf32, #tpu.memory_space<vmem>>, %arg10: memref<128x128xf32, #tpu.memory_space<vmem>>, %arg11: memref<1x128xf32, #tpu.memory_space<vmem>>, %arg12: memref<2x128xf32, #tpu.memory_space<vmem>>) attributes {dimension_semantics = [#tpu.dimension_semantics<parallel>], iteration_bounds = array<i64: 1>, scalar_prefetch = 0 : i64, scratch_operands = 0 : i64, tpu.core_type = #tpu.core_type<tc>, window_params = [{transform_indices = @transform_0, window_bounds = array<i64: 128, 48>}, {pipeline_mode = #tpu.pipeline_mode<synchronous>, transform_indices = @transform_1, window_bounds = array<i64: 48, 128>}, {pipeline_mode = #tpu.pipeline_mode<synchronous>, transform_indices = @transform_2, window_bounds = array<i64: 1, 128>}, {pipeline_mode = #tpu.pipeline_mode<synchronous>, transform_indices = @transform_3, window_bounds = array<i64: 128, 128>}, {pipeline_mode = #tpu.pipeline_mode<synchronous>, transform_indices = @transform_4, window_bounds = array<i64: 1, 128>}, {pipeline_mode = #tpu.pipeline_mode<synchronous>, transform_indices = @transform_5, window_bounds = array<i64: 128, 128>}, {pipeline_mode = #tpu.pipeline_mode<synchronous>, transform_indices = @transform_6, window_bounds = array<i64: 1, 128>}, {pipeline_mode = #tpu.pipeline_mode<synchronous>, transform_indices = @transform_7, window_bounds = array<i64: 128, 128>}, {pipeline_mode = #tpu.pipeline_mode<synchronous>, transform_indices = @transform_8, window_bounds = array<i64: 1, 128>}, {pipeline_mode = #tpu.pipeline_mode<synchronous>, transform_indices = @transform_9, window_bounds = array<i64: 128, 128>}, {pipeline_mode = #tpu.pipeline_mode<synchronous>, transform_indices = @transform_10, window_bounds = array<i64: 1, 128>}, {transform_indices = @transform_11, window_bounds = array<i64: 2, 128>}]} {
    %c0 = arith.constant 0 : index
    %c0_0 = arith.constant 0 : index
    %0 = vector.load %arg1[%c0, %c0_0] : memref<128x48xbf16, #tpu.memory_space<vmem>>, vector<128x48xbf16>
    %c0_1 = arith.constant 0 : index
    %c0_2 = arith.constant 0 : index
    %1 = vector.load %arg2[%c0_1, %c0_2] : memref<48x128xbf16, #tpu.memory_space<vmem>>, vector<48x128xbf16>
    %cst = arith.constant dense<0.000000e+00> : vector<128x128xf32>
    %2 = tpu.matmul %0, %1, %cst {dimension_numbers = #tpu.dot_dimension_numbers<[1], [0], [0], [1], [0, 0, 1, 1], [], []>} : vector<128x48xbf16>, vector<48x128xbf16>, vector<128x128xf32> -> vector<128x128xf32>
    %c0_3 = arith.constant 0 : index
    %c0_4 = arith.constant 0 : index
    %3 = vector.load %arg3[%c0_3, %c0_4] : memref<1x128xf32, #tpu.memory_space<vmem>>, vector<1x128xf32>
    %4 = vector.broadcast %3 : vector<1x128xf32> to vector<128x128xf32>
    %5 = arith.addf %2, %4 : vector<128x128xf32>
    %6 = arith.truncf %5 : vector<128x128xf32> to vector<128x128xbf16>
    %cst_5 = arith.constant 1.000980e-01 : bf16
    %7 = vector.broadcast %cst_5 : bf16 to vector<128x128xbf16>
    %8 = arith.mulf %7, %6 : vector<128x128xbf16>
    %9 = arith.maximumf %6, %8 : vector<128x128xbf16>
    %c0_6 = arith.constant 0 : index
    %c0_7 = arith.constant 0 : index
    %10 = vector.load %arg4[%c0_6, %c0_7] : memref<128x128xbf16, #tpu.memory_space<vmem>>, vector<128x128xbf16>
    %cst_8 = arith.constant dense<0.000000e+00> : vector<128x128xf32>
    %11 = tpu.matmul %9, %10, %cst_8 {dimension_numbers = #tpu.dot_dimension_numbers<[1], [0], [0], [1], [0, 0, 1, 1], [], []>} : vector<128x128xbf16>, vector<128x128xbf16>, vector<128x128xf32> -> vector<128x128xf32>
    %c0_9 = arith.constant 0 : index
    %c0_10 = arith.constant 0 : index
    %12 = vector.load %arg5[%c0_9, %c0_10] : memref<1x128xf32, #tpu.memory_space<vmem>>, vector<1x128xf32>
    %13 = vector.broadcast %12 : vector<1x128xf32> to vector<128x128xf32>
    %14 = arith.addf %11, %13 : vector<128x128xf32>
    %15 = arith.truncf %14 : vector<128x128xf32> to vector<128x128xbf16>
    %cst_11 = arith.constant 1.000980e-01 : bf16
    %16 = vector.broadcast %cst_11 : bf16 to vector<128x128xbf16>
    %17 = arith.mulf %16, %15 : vector<128x128xbf16>
    %18 = arith.maximumf %15, %17 : vector<128x128xbf16>
    %c0_12 = arith.constant 0 : index
    %c0_13 = arith.constant 0 : index
    %19 = vector.load %arg6[%c0_12, %c0_13] : memref<128x128xbf16, #tpu.memory_space<vmem>>, vector<128x128xbf16>
    %cst_14 = arith.constant dense<0.000000e+00> : vector<128x128xf32>
    %20 = tpu.matmul %18, %19, %cst_14 {dimension_numbers = #tpu.dot_dimension_numbers<[1], [0], [0], [1], [0, 0, 1, 1], [], []>} : vector<128x128xbf16>, vector<128x128xbf16>, vector<128x128xf32> -> vector<128x128xf32>
    %c0_15 = arith.constant 0 : index
    %c0_16 = arith.constant 0 : index
    %21 = vector.load %arg7[%c0_15, %c0_16] : memref<1x128xf32, #tpu.memory_space<vmem>>, vector<1x128xf32>
    %22 = vector.broadcast %21 : vector<1x128xf32> to vector<128x128xf32>
    %23 = arith.addf %20, %22 : vector<128x128xf32>
    %24 = arith.truncf %23 : vector<128x128xf32> to vector<128x128xbf16>
    %cst_17 = arith.constant 1.000980e-01 : bf16
    %25 = vector.broadcast %cst_17 : bf16 to vector<128x128xbf16>
    %26 = arith.mulf %25, %24 : vector<128x128xbf16>
    %27 = arith.maximumf %24, %26 : vector<128x128xbf16>
    %c0_18 = arith.constant 0 : index
    %c0_19 = arith.constant 0 : index
    %28 = vector.load %arg8[%c0_18, %c0_19] : memref<128x128xbf16, #tpu.memory_space<vmem>>, vector<128x128xbf16>
    %cst_20 = arith.constant dense<0.000000e+00> : vector<128x128xf32>
    %29 = tpu.matmul %27, %28, %cst_20 {dimension_numbers = #tpu.dot_dimension_numbers<[1], [0], [0], [1], [0, 0, 1, 1], [], []>} : vector<128x128xbf16>, vector<128x128xbf16>, vector<128x128xf32> -> vector<128x128xf32>
    %c0_21 = arith.constant 0 : index
    %c0_22 = arith.constant 0 : index
    %30 = vector.load %arg9[%c0_21, %c0_22] : memref<1x128xf32, #tpu.memory_space<vmem>>, vector<1x128xf32>
    %31 = vector.broadcast %30 : vector<1x128xf32> to vector<128x128xf32>
    %32 = arith.addf %29, %31 : vector<128x128xf32>
    %cst_23 = arith.constant 1.000000e-01 : f32
    %33 = vector.broadcast %cst_23 : f32 to vector<128x128xf32>
    %34 = arith.mulf %33, %32 : vector<128x128xf32>
    %35 = arith.maximumf %32, %34 : vector<128x128xf32>
    %36 = vector.shape_cast %35 : vector<128x128xf32> to vector<2x64x128xf32>
    %cst_24 = arith.constant dense<0.000000e+00> : vector<2x128xf32>
    %37 = vector.multi_reduction <add>, %36, %cst_24 [1] : vector<2x64x128xf32> to vector<2x128xf32>
    %c0_25 = arith.constant 0 : index
    %c0_26 = arith.constant 0 : index
    %38 = vector.load %arg10[%c0_25, %c0_26] : memref<128x128xf32, #tpu.memory_space<vmem>>, vector<128x128xf32>
    %cst_27 = arith.constant dense<0.000000e+00> : vector<2x128xf32>
    %39 = tpu.matmul %37, %38, %cst_27 {dimension_numbers = #tpu.dot_dimension_numbers<[1], [0], [0], [1], [0, 0, 1, 1], [], []>} : vector<2x128xf32>, vector<128x128xf32>, vector<2x128xf32> -> vector<2x128xf32>
    %c0_28 = arith.constant 0 : index
    %c0_29 = arith.constant 0 : index
    %40 = vector.load %arg11[%c0_28, %c0_29] : memref<1x128xf32, #tpu.memory_space<vmem>>, vector<1x128xf32>
    %41 = vector.broadcast %40 : vector<1x128xf32> to vector<2x128xf32>
    %42 = arith.addf %39, %41 : vector<2x128xf32>
    %c0_30 = arith.constant 0 : index
    %c0_31 = arith.constant 0 : index
    %43 = vector.load %arg12[%c0_30, %c0_31] : memref<2x128xf32, #tpu.memory_space<vmem>>, vector<2x128xf32>
    tpu.vector_store %arg12[%c0_30, %c0_31], %42 {strides = array<i32>} : memref<2x128xf32, #tpu.memory_space<vmem>>, vector<2x128xf32>,
    return
  }
  func.func @transform_0(%arg0: i32) -> (i32, i32) {
    %c0_i32 = arith.constant 0 : i32
    %c0_i32_0 = arith.constant 0 : i32
    return %arg0, %c0_i32 : i32, i32
  }
  func.func @transform_1(%arg0: i32) -> (i32, i32) {
    %c0_i32 = arith.constant 0 : i32
    %c0_i32_0 = arith.constant 0 : i32
    %c0_i32_1 = arith.constant 0 : i32
    return %c0_i32, %c0_i32_0 : i32, i32
  }
  func.func @transform_2(%arg0: i32) -> (i32, i32) {
    %c0_i32 = arith.constant 0 : i32
    %c0_i32_0 = arith.constant 0 : i32
    %c0_i32_1 = arith.constant 0 : i32
    return %c0_i32, %c0_i32_0 : i32, i32
  }
  func.func @transform_3(%arg0: i32) -> (i32, i32) {
    %c0_i32 = arith.constant 0 : i32
    %c0_i32_0 = arith.constant 0 : i32
    %c0_i32_1 = arith.constant 0 : i32
    return %c0_i32, %c0_i32_0 : i32, i32
  }
  func.func @transform_4(%arg0: i32) -> (i32, i32) {
    %c0_i32 = arith.constant 0 : i32
    %c0_i32_0 = arith.constant 0 : i32
    %c0_i32_1 = arith.constant 0 : i32
    return %c0_i32, %c0_i32_0 : i32, i32
  }
  func.func @transform_5(%arg0: i32) -> (i32, i32) {
    %c0_i32 = arith.constant 0 : i32
    %c0_i32_0 = arith.constant 0 : i32
    %c0_i32_1 = arith.constant 0 : i32
    return %c0_i32, %c0_i32_0 : i32, i32
  }
  func.func @transform_6(%arg0: i32) -> (i32, i32) {
    %c0_i32 = arith.constant 0 : i32
    %c0_i32_0 = arith.constant 0 : i32
    %c0_i32_1 = arith.constant 0 : i32
    return %c0_i32, %c0_i32_0 : i32, i32
  }
  func.func @transform_7(%arg0: i32) -> (i32, i32) {
    %c0_i32 = arith.constant 0 : i32
    %c0_i32_0 = arith.constant 0 : i32
    %c0_i32_1 = arith.constant 0 : i32
    return %c0_i32, %c0_i32_0 : i32, i32
  }
  func.func @transform_8(%arg0: i32) -> (i32, i32) {
    %c0_i32 = arith.constant 0 : i32
    %c0_i32_0 = arith.constant 0 : i32
    %c0_i32_1 = arith.constant 0 : i32
    return %c0_i32, %c0_i32_0 : i32, i32
  }
  func.func @transform_9(%arg0: i32) -> (i32, i32) {
    %c0_i32 = arith.constant 0 : i32
    %c0_i32_0 = arith.constant 0 : i32
    %c0_i32_1 = arith.constant 0 : i32
    return %c0_i32, %c0_i32_0 : i32, i32
  }
  func.func @transform_10(%arg0: i32) -> (i32, i32) {
    %c0_i32 = arith.constant 0 : i32
    %c0_i32_0 = arith.constant 0 : i32
    %c0_i32_1 = arith.constant 0 : i32
    return %c0_i32, %c0_i32_0 : i32, i32
  }
  func.func @transform_11(%arg0: i32) -> (i32, i32) {
    %c0_i32 = arith.constant 0 : i32
    %c0_i32_0 = arith.constant 0 : i32
    return %arg0, %c0_i32 : i32, i32
  }
}

</mosaic_0001>

<llo_original>
// kernel: tpu_custom_call.1
$region0: #{tpu_custom_call.1}
  #allocation0 [shape = 'u32[]', space=smem, size = 0x4, offset = 0x4, fixed_abs, tag = 'smem constant byte address 0x4 - core index']
  #allocation1 [shape = 'u32[144,128]{1,0:T(1,128)}', space=vmem, size = 0x12000, scoped, tag = 'internal scratch']
  %s0 = inlined_call_operand.vmem [shape: bf16[128,48], index: 0, kind: input, shape index: {}]
  %s1 = inlined_call_operand.vmem [shape: bf16[48,128], index: 1, kind: input, shape index: {}]
  %s2 = inlined_call_operand.vmem [shape: f32[1,128], index: 2, kind: input, shape index: {}]
  %s3 = inlined_call_operand.vmem [shape: bf16[128,128], index: 3, kind: input, shape index: {}]
  %s4 = inlined_call_operand.vmem [shape: f32[1,128], index: 4, kind: input, shape index: {}]
  %s5 = inlined_call_operand.hbm [shape: bf16[128,128], index: 5, kind: input, shape index: {}]
  %s6 = inlined_call_operand.vmem [shape: f32[1,128], index: 6, kind: input, shape index: {}]
  %s7 = inlined_call_operand.hbm [shape: bf16[128,128], index: 7, kind: input, shape index: {}]
  %s8 = inlined_call_operand.vmem [shape: f32[1,128], index: 8, kind: input, shape index: {}]
  %s9 = inlined_call_operand.hbm [shape: f32[128,128], index: 9, kind: input, shape index: {}]
  %s10 = inlined_call_operand.vmem [shape: f32[1,128], index: 10, kind: input, shape index: {}]
  %s11 = inlined_call_operand.hbm [shape: f32[2,128], index: 11, kind: output, shape index: {}]
  %s12 = sld [smem:[#allocation0]]
  $region66: #{tpu_custom_call.1} parent=0
    _
  %s14 = ssub.s32 1, %s12
  %s15 = scalar_select 0, %s14, %s12
  $region1: #{tpu_custom_call.1} parent=0
    #allocation2 [shape = 'u8[32768]{0}', space=vmem, size = 0x8000, scoped, tag = 'input window, operand 5, single buffered']
    #allocation3 [shape = 's32[1]{0}', space=sflag, size = 0x4, scoped, tag = 'scoped memory for tpu_custom_call.1']
    #allocation4 [shape = 's32[1]{0}', space=sflag, size = 0x4, scoped, tag = 'scoped memory for tpu_custom_call.1']
    #allocation5 [shape = 'u8[32768]{0}', space=vmem, size = 0x8000, scoped, tag = 'input window, operand 7, single buffered']
    #allocation6 [shape = 's32[1]{0}', space=sflag, size = 0x4, scoped, tag = 'scoped memory for tpu_custom_call.1']
    #allocation7 [shape = 'u8[65536]{0}', space=vmem, size = 0x10000, scoped, tag = 'input window, operand 9, single buffered']
    #allocation8 [shape = 'u8[1024]{0}', space=vmem, size = 0x400, scoped, tag = 'output window, operand 0, single buffered']
    %16 = vsyncpa [#allocation3], 0
    %17 = vsyncpa [#allocation6], 0
    %18 = vsyncpa [#allocation4], 0
    // Predicated region
    $region2: #{tpu_custom_call.1} parent=1 // pred_check
      _
    $region3: #{tpu_custom_call.1} parent=1 // pred_check_branch
      %20 = sbr.rel (0) target = $region5
    $region4: #{tpu_custom_call.1} parent=1 // pred_region
      _
    $region5: #{tpu_custom_call.1} parent=1 // pred_fallthru
      _
    // Predicated region
    $region6: #{tpu_custom_call.1} parent=1 // pred_check
      _
    $region7: #{tpu_custom_call.1} parent=1 // pred_check_branch
      %22 = sbr.rel (0) target = $region9
    $region8: #{tpu_custom_call.1} parent=1 // pred_region
      _
    $region9: #{tpu_custom_call.1} parent=1 // pred_fallthru
      _
    // Predicated region
    $region10: #{tpu_custom_call.1} parent=1 // pred_check
      _
    $region11: #{tpu_custom_call.1} parent=1 // pred_check_branch
      %24 = sbr.rel (0) target = $region13
    $region12: #{tpu_custom_call.1} parent=1 // pred_region
      _
    $region13: #{tpu_custom_call.1} parent=1 // pred_fallthru
      _
    // Predicated region
    $region14: #{tpu_custom_call.1} parent=1 // pred_check
      _
    $region15: #{tpu_custom_call.1} parent=1 // pred_check_branch
      %26 = sbr.rel (0) target = $region17
    $region16: #{tpu_custom_call.1} parent=1 // pred_region
      _
    $region17: #{tpu_custom_call.1} parent=1 // pred_fallthru
      _
    // Predicated region
    $region18: #{tpu_custom_call.1} parent=1 // pred_check
      _
    $region19: #{tpu_custom_call.1} parent=1 // pred_check_branch
      %28 = sbr.rel (0) target = $region21
    $region20: #{tpu_custom_call.1} parent=1 // pred_region
      _
    $region21: #{tpu_custom_call.1} parent=1 // pred_fallthru
      _
    // Predicated region
    $region22: #{tpu_custom_call.1} parent=1 // pred_check
      _
    $region23: #{tpu_custom_call.1} parent=1 // pred_check_branch
      %30 = sbr.rel (0) target = $region25
    $region24: #{tpu_custom_call.1} parent=1 // pred_region
      %s32 = ssub.s32 1024, 1024
      %33 = vsyncadd [#allocation3], %s32
      %s34 = sshll.u32 [#allocation2], 4
      %s35 = int_to_ptr.vmem [resolvable:$true] %s34
      %40 = dma.hbm_to_vmem [thread:$0]  %s5, 1024, %s35, [#allocation3], 64, 64, 4
    $region25: #{tpu_custom_call.1} parent=1 // pred_fallthru
      _
    // Predicated region
    $region26: #{tpu_custom_call.1} parent=1 // pred_check
      _
    $region27: #{tpu_custom_call.1} parent=1 // pred_check_branch
      %42 = sbr.rel (0) target = $region29
    $region28: #{tpu_custom_call.1} parent=1 // pred_region
      _
    $region29: #{tpu_custom_call.1} parent=1 // pred_fallthru
      _
    // Predicated region
    $region30: #{tpu_custom_call.1} parent=1 // pred_check
      _
    $region31: #{tpu_custom_call.1} parent=1 // pred_check_branch
      %44 = sbr.rel (0) target = $region33
    $region32: #{tpu_custom_call.1} parent=1 // pred_region
      %s46 = ssub.s32 1024, 1024
      %47 = vsyncadd [#allocation6], %s46
      %s48 = sshll.u32 [#allocation5], 4
      %s49 = int_to_ptr.vmem [resolvable:$true] %s48
      %54 = dma.hbm_to_vmem [thread:$0]  %s7, 1024, %s49, [#allocation6], 64, 64, 4
    $region33: #{tpu_custom_call.1} parent=1 // pred_fallthru
      _
    // Predicated region
    $region34: #{tpu_custom_call.1} parent=1 // pred_check
      _
    $region35: #{tpu_custom_call.1} parent=1 // pred_check_branch
      %56 = sbr.rel (0) target = $region37
    $region36: #{tpu_custom_call.1} parent=1 // pred_region
      _
    $region37: #{tpu_custom_call.1} parent=1 // pred_fallthru
      _
    // Predicated region
    $region38: #{tpu_custom_call.1} parent=1 // pred_check
      _
    $region39: #{tpu_custom_call.1} parent=1 // pred_check_branch
      %58 = sbr.rel (0) target = $region41
    $region40: #{tpu_custom_call.1} parent=1 // pred_region
      %s60 = ssub.s32 2048, 2048
      %61 = vsyncadd [#allocation6], %s60
      %s62 = sshll.u32 [#allocation7], 4
      %s63 = int_to_ptr.vmem [resolvable:$true] %s62
      %68 = dma.hbm_to_vmem [thread:$0]  %s9, 2048, %s63, [#allocation6], 128, 128, 8
    $region41: #{tpu_custom_call.1} parent=1 // pred_fallthru
      _
    // Predicated region
    $region42: #{tpu_custom_call.1} parent=1 // pred_check
      _
    $region43: #{tpu_custom_call.1} parent=1 // pred_check_branch
      %70 = sbr.rel (0) target = $region45
    $region44: #{tpu_custom_call.1} parent=1 // pred_region
      _
    $region45: #{tpu_custom_call.1} parent=1 // pred_fallthru
      _
    // Predicated region
    $region46: #{tpu_custom_call.1} parent=1 // pred_check
      _
    $region47: #{tpu_custom_call.1} parent=1 // pred_check_branch
      %72 = sbr.rel (0) target = $region49
    $region48: #{tpu_custom_call.1} parent=1 // pred_region
      %73 = dma.done [#allocation3], 1024
    $region49: #{tpu_custom_call.1} parent=1 // pred_fallthru
      _
    // Predicated region
    $region50: #{tpu_custom_call.1} parent=1 // pred_check
      _
    $region51: #{tpu_custom_call.1} parent=1 // pred_check_branch
      %75 = sbr.rel (0) target = $region53
    $region52: #{tpu_custom_call.1} parent=1 // pred_region
      %76 = dma.done [#allocation6], 1024
    $region53: #{tpu_custom_call.1} parent=1 // pred_fallthru
      _
    // Predicated region
    $region54: #{tpu_custom_call.1} parent=1 // pred_check
      _
    $region55: #{tpu_custom_call.1} parent=1 // pred_check_branch
      %78 = sbr.rel (0) target = $region57
    $region56: #{tpu_custom_call.1} parent=1 // pred_region
      %79 = dma.done [#allocation6], 2048
    $region57: #{tpu_custom_call.1} parent=1 // pred_fallthru
      _
    %v82 = vld [vmem:[%s0] sm:$0xf]
    %v83 = vld [vmem:[%s0 + $0x4] sm:$0xf]
    %v84 = vld [vmem:[%s0 + $0x8] sm:$0xf]
    %v85 = vld [vmem:[%s0 + $0xc] sm:$0xf]
    %v86 = vld [vmem:[%s0 + $0x10] sm:$0xf]
    %v87 = vld [vmem:[%s0 + $0x14] sm:$0xf]
    %v88 = vld [vmem:[%s0 + $0x18] sm:$0xf]
    %v89 = vld [vmem:[%s0 + $0x1c] sm:$0xf]
    %v90 = vld [vmem:[%s0 + $0x20] sm:$0xf]
    %v91 = vld [vmem:[%s0 + $0x24] sm:$0xf]
    %v92 = vld [vmem:[%s0 + $0x28] sm:$0xf]
    %v93 = vld [vmem:[%s0 + $0x2c] sm:$0xf]
    %v94 = vld [vmem:[%s0 + $0x30] sm:$0xf]
    %v95 = vld [vmem:[%s0 + $0x34] sm:$0xf]
    %v96 = vld [vmem:[%s0 + $0x38] sm:$0xf]
    %v97 = vld [vmem:[%s0 + $0x3c] sm:$0xf]
    %v98 = vld [vmem:[%s1] sm:$0xf]
    %v99 = vld [vmem:[%s1 + $0x4] sm:$0xf]
    %v100 = vld [vmem:[%s1 + $0x8] sm:$0xf]
    %v101 = vld [vmem:[%s1 + $0xc] sm:$0xf]
    %v102 = vld [vmem:[%s1 + $0x10] sm:$0xf]
    %v103 = vld [vmem:[%s1 + $0x14] sm:$0xf]
    %v104 = vld [vmem:[%s2] sm:$0x1]
    %v106 = vlaneseq
    %v107 = vshrl.u32 %v106, 7
    %v108 = vsub.s32 0, %v107
    %v109 = vrot.slane %v104, %v108
    %v127 = vunpack.c.l.b16 %v82
    %v128 = vunpack.c.l.b16 %v83
    %v129 = vunpack.c.l.b16 %v84
    %v130 = vunpack.c.l.b16 %v85
    %v131 = vunpack.c.l.b16 %v86
    %v132 = vunpack.c.l.b16 %v87
    %v133 = vunpack.c.l.b16 %v88
    %v134 = vunpack.c.l.b16 %v89
    %v135 = vunpack.c.l.b16 %v90
    %v136 = vunpack.c.l.b16 %v91
    %v137 = vunpack.c.l.b16 %v92
    %v138 = vunpack.c.l.b16 %v93
    %v139 = vunpack.c.l.b16 %v94
    %v140 = vunpack.c.l.b16 %v95
    %v141 = vunpack.c.l.b16 %v96
    %v142 = vunpack.c.l.b16 %v97
    %v143 = vpack.c.b16 %v128, %v127
    %v144 = vpack.c.b16 %v130, %v129
    %v145 = vpack.c.b16 %v132, %v131
    %v146 = vpack.c.b16 %v134, %v133
    %v147 = vpack.c.b16 %v136, %v135
    %v148 = vpack.c.b16 %v138, %v137
    %v149 = vpack.c.b16 %v140, %v139
    %v150 = vpack.c.b16 %v142, %v141
    %v157 = vunpack.c.l.b16 %v98
    %v158 = vunpack.c.l.b16 %v99
    %v159 = vunpack.c.l.b16 %v100
    %v160 = vunpack.c.l.b16 %v101
    %v161 = vunpack.c.l.b16 %v102
    %v162 = vunpack.c.l.b16 %v103
    %v163 = vpack.c.b16 %v158, %v157
    %v164 = vpack.c.b16 %v160, %v159
    %v165 = vpack.c.b16 %v162, %v161
    %vm169 = vcmask 392192
    %v171 = vsel %vm169, %v143, 0
    %v174 = vsel %vm169, %v144, 0
    %v177 = vsel %vm169, %v145, 0
    %v180 = vsel %vm169, %v146, 0
    %v183 = vsel %vm169, %v147, 0
    %v186 = vsel %vm169, %v148, 0
    %v189 = vsel %vm169, %v149, 0
    %v192 = vsel %vm169, %v150, 0
    %194 = vmatprep.subr.bf16.mxu0 0
    %195 = vmatpush1.bf16.msra.mxu0 %v163
    %196 = vmatprep.subr.bf16.mxu0 0
    %197 = vmatpush1.bf16.msra.mxu0 %v164
    %198 = vmatprep.subr.bf16.mxu0 0
    %199 = vmatpush1.bf16.msra.mxu0 %v165
    %200 = vmatprep.subr.bf16.mxu0 0
    %201 = vmatpush1.bf16.msra.mxu0 0
    %202 = vmatprep.subr.bf16.mxu0 0
    %203 = vmatpush1.bf16.msra.mxu0 0
    %204 = vmatprep.subr.bf16.mxu0 0
    %205 = vmatpush1.bf16.msra.mxu0 0
    %206 = vmatprep.subr.bf16.mxu0 0
    %207 = vmatpush1.bf16.msra.mxu0 0
    %208 = vmatprep.subr.bf16.mxu0 0
    %209 = vmatpush1.bf16.msra.mxu0 0
    %210 = vmatprep.subr.bf16.mxu0 0
    %211 = vmatpush1.bf16.msra.mxu0 0
    %212 = vmatprep.subr.bf16.mxu0 0
    %213 = vmatpush1.bf16.msra.mxu0 0
    %214 = vmatprep.subr.bf16.mxu0 0
    %215 = vmatpush1.bf16.msra.mxu0 0
    %216 = vmatprep.subr.bf16.mxu0 0
    %217 = vmatpush1.bf16.msra.mxu0 0
    %218 = vmatprep.subr.bf16.mxu0 0
    %219 = vmatpush1.bf16.msra.mxu0 0
    %220 = vmatprep.subr.bf16.mxu0 0
    %221 = vmatpush1.bf16.msra.mxu0 0
    %222 = vmatprep.subr.bf16.mxu0 0
    %223 = vmatpush1.bf16.msra.mxu0 0
    %224 = vmatprep.subr.bf16.mxu0 0
    %225 = vmatpush1.bf16.msra.mxu0 0
    %226 = vmatprep.mubr.bf16.mxu0 0
    %227 = vmatmul.mubr.bf16.gmra.mrb[0].mxu0 %v171
    %v228 = vpop.f32.mrb[0].mxu0
    %v229 = vadd.f32 %v109, %v228
    %v230 = vpop.f32.mrb[0].mxu0
    %v231 = vpop.f32.mrb[0].mxu0
    %v232 = vadd.f32 %v109, %v231
    %v233 = vpop.f32.mrb[0].mxu0
    %234 = vmatprep.mubr.bf16.mxu0 0
    %235 = vmatmul.mubr.bf16.gmra.mrb[0].mxu0 %v174
    %v236 = vpop.f32.mrb[0].mxu0
    %v237 = vadd.f32 %v109, %v236
    %v238 = vpop.f32.mrb[0].mxu0
    %v239 = vpop.f32.mrb[0].mxu0
    %v240 = vadd.f32 %v109, %v239
    %v241 = vpop.f32.mrb[0].mxu0
    %242 = vmatprep.mubr.bf16.mxu0 0
    %243 = vmatmul.mubr.bf16.gmra.mrb[0].mxu0 %v177
    %v244 = vpop.f32.mrb[0].mxu0
    %v245 = vadd.f32 %v109, %v244
    %v246 = vpop.f32.mrb[0].mxu0
    %v247 = vpop.f32.mrb[0].mxu0
    %v248 = vadd.f32 %v109, %v247
    %v249 = vpop.f32.mrb[0].mxu0
    %250 = vmatprep.mubr.bf16.mxu0 0
    %251 = vmatmul.mubr.bf16.gmra.mrb[0].mxu0 %v180
    %v252 = vpop.f32.mrb[0].mxu0
    %v253 = vadd.f32 %v109, %v252
    %v254 = vpop.f32.mrb[0].mxu0
    %v255 = vpop.f32.mrb[0].mxu0
    %v256 = vadd.f32 %v109, %v255
    %v257 = vpop.f32.mrb[0].mxu0
    %258 = vmatprep.mubr.bf16.mxu0 0
    %259 = vmatmul.mubr.bf16.gmra.mrb[0].mxu0 %v183
    %v260 = vpop.f32.mrb[0].mxu0
    %v261 = vadd.f32 %v109, %v260
    %v262 = vpop.f32.mrb[0].mxu0
    %v263 = vpop.f32.mrb[0].mxu0
    %v264 = vadd.f32 %v109, %v263
    %v265 = vpop.f32.mrb[0].mxu0
    %266 = vmatprep.mubr.bf16.mxu0 0
    %267 = vmatmul.mubr.bf16.gmra.mrb[0].mxu0 %v186
    %v268 = vpop.f32.mrb[0].mxu0
    %v269 = vadd.f32 %v109, %v268
    %v270 = vpop.f32.mrb[0].mxu0
    %v271 = vpop.f32.mrb[0].mxu0
    %v272 = vadd.f32 %v109, %v271
    %v273 = vpop.f32.mrb[0].mxu0
    %274 = vmatprep.mubr.bf16.mxu0 0
    %275 = vmatmul.mubr.bf16.gmra.mrb[0].mxu0 %v189
    %v276 = vpop.f32.mrb[0].mxu0
    %v277 = vadd.f32 %v109, %v276
    %v278 = vpop.f32.mrb[0].mxu0
    %v279 = vpop.f32.mrb[0].mxu0
    %v280 = vadd.f32 %v109, %v279
    %v281 = vpop.f32.mrb[0].mxu0
    %282 = vmatprep.mubr.bf16.mxu0 0
    %283 = vmatmul.mubr.bf16.gmra.mrb[0].mxu0 %v192
    %v284 = vpop.f32.mrb[0].mxu0
    %v285 = vadd.f32 %v109, %v284
    %v286 = vpop.f32.mrb[0].mxu0
    %v287 = vpop.f32.mrb[0].mxu0
    %v288 = vadd.f32 %v109, %v287
    %v289 = vpop.f32.mrb[0].mxu0
    %290 = vdwg.mxu0
    %v291 = vpack.c.bf16 %v232, %v229
    %v292 = vpack.c.bf16 %v240, %v237
    %v293 = vpack.c.bf16 %v248, %v245
    %v294 = vpack.c.bf16 %v256, %v253
    %v295 = vpack.c.bf16 %v264, %v261
    %v296 = vpack.c.bf16 %v272, %v269
    %v297 = vpack.c.bf16 %v280, %v277
    %v298 = vpack.c.bf16 %v288, %v285
    %v299 = vmul.bf16 %v291, 1036860877
    %v300 = vmul.bf16 %v292, 1036860877
    %v301 = vmul.bf16 %v293, 1036860877
    %v302 = vmul.bf16 %v294, 1036860877
    %v303 = vmul.bf16 %v295, 1036860877
    %v304 = vmul.bf16 %v296, 1036860877
    %v305 = vmul.bf16 %v297, 1036860877
    %v306 = vmul.bf16 %v298, 1036860877
    %v307 = vmax.bf16 %v291, %v299
    %v308 = vmax.bf16 %v292, %v300
    %v309 = vmax.bf16 %v293, %v301
    %v310 = vmax.bf16 %v294, %v302
    %v311 = vmax.bf16 %v295, %v303
    %v312 = vmax.bf16 %v296, %v304
    %v313 = vmax.bf16 %v297, %v305
    %v314 = vmax.bf16 %v298, %v306
    %v315 = vld [vmem:[%s3] sm:$0xf]
    %v316 = vld [vmem:[%s3 + $0x4] sm:$0xf]
    %v317 = vld [vmem:[%s3 + $0x8] sm:$0xf]
    %v318 = vld [vmem:[%s3 + $0xc] sm:$0xf]
    %v319 = vld [vmem:[%s3 + $0x10] sm:$0xf]
    %v320 = vld [vmem:[%s3 + $0x14] sm:$0xf]
    %v321 = vld [vmem:[%s3 + $0x18] sm:$0xf]
    %v322 = vld [vmem:[%s3 + $0x1c] sm:$0xf]
    %v323 = vld [vmem:[%s3 + $0x20] sm:$0xf]
    %v324 = vld [vmem:[%s3 + $0x24] sm:$0xf]
    %v325 = vld [vmem:[%s3 + $0x28] sm:$0xf]
    %v326 = vld [vmem:[%s3 + $0x2c] sm:$0xf]
    %v327 = vld [vmem:[%s3 + $0x30] sm:$0xf]
    %v328 = vld [vmem:[%s3 + $0x34] sm:$0xf]
    %v329 = vld [vmem:[%s3 + $0x38] sm:$0xf]
    %v330 = vld [vmem:[%s3 + $0x3c] sm:$0xf]
    %v331 = vld [vmem:[%s4] sm:$0x1]
    %v333 = vlaneseq
    %v334 = vshrl.u32 %v333, 7
    %v335 = vsub.s32 0, %v334
    %v336 = vrot.slane %v331, %v335
    %v354 = vunpack.c.l.b16 %v315
    %v355 = vunpack.c.l.b16 %v316
    %v356 = vunpack.c.l.b16 %v317
    %v357 = vunpack.c.l.b16 %v318
    %v358 = vunpack.c.l.b16 %v319
    %v359 = vunpack.c.l.b16 %v320
    %v360 = vunpack.c.l.b16 %v321
    %v361 = vunpack.c.l.b16 %v322
    %v362 = vunpack.c.l.b16 %v323
    %v363 = vunpack.c.l.b16 %v324
    %v364 = vunpack.c.l.b16 %v325
    %v365 = vunpack.c.l.b16 %v326
    %v366 = vunpack.c.l.b16 %v327
    %v367 = vunpack.c.l.b16 %v328
    %v368 = vunpack.c.l.b16 %v329
    %v369 = vunpack.c.l.b16 %v330
    %v370 = vpack.c.b16 %v355, %v354
    %v371 = vpack.c.b16 %v357, %v356
    %v372 = vpack.c.b16 %v359, %v358
    %v373 = vpack.c.b16 %v361, %v360
    %v374 = vpack.c.b16 %v363, %v362
    %v375 = vpack.c.b16 %v365, %v364
    %v376 = vpack.c.b16 %v367, %v366
    %v377 = vpack.c.b16 %v369, %v368
    %386 = vmatprep.subr.bf16.mxu0 0
    %387 = vmatpush1.bf16.msra.mxu0 %v370
    %388 = vmatprep.subr.bf16.mxu0 0
    %389 = vmatpush1.bf16.msra.mxu0 %v371
    %390 = vmatprep.subr.bf16.mxu0 0
    %391 = vmatpush1.bf16.msra.mxu0 %v372
    %392 = vmatprep.subr.bf16.mxu0 0
    %393 = vmatpush1.bf16.msra.mxu0 %v373
    %394 = vmatprep.subr.bf16.mxu0 0
    %395 = vmatpush1.bf16.msra.mxu0 %v374
    %396 = vmatprep.subr.bf16.mxu0 0
    %397 = vmatpush1.bf16.msra.mxu0 %v375
    %398 = vmatprep.subr.bf16.mxu0 0
    %399 = vmatpush1.bf16.msra.mxu0 %v376
    %400 = vmatprep.subr.bf16.mxu0 0
    %401 = vmatpush1.bf16.msra.mxu0 %v377
    %402 = vmatprep.subr.bf16.mxu0 0
    %403 = vmatpush1.bf16.msra.mxu0 0
    %404 = vmatprep.subr.bf16.mxu0 0
    %405 = vmatpush1.bf16.msra.mxu0 0
    %406 = vmatprep.subr.bf16.mxu0 0
    %407 = vmatpush1.bf16.msra.mxu0 0
    %408 = vmatprep.subr.bf16.mxu0 0
    %409 = vmatpush1.bf16.msra.mxu0 0
    %410 = vmatprep.subr.bf16.mxu0 0
    %411 = vmatpush1.bf16.msra.mxu0 0
    %412 = vmatprep.subr.bf16.mxu0 0
    %413 = vmatpush1.bf16.msra.mxu0 0
    %414 = vmatprep.subr.bf16.mxu0 0
    %415 = vmatpush1.bf16.msra.mxu0 0
    %416 = vmatprep.subr.bf16.mxu0 0
    %417 = vmatpush1.bf16.msra.mxu0 0
    %418 = vmatprep.mubr.bf16.mxu0 0
    %419 = vmatmul.mubr.bf16.gmra.mrb[0].mxu0 %v307
    %v420 = vpop.f32.mrb[0].mxu0
    %v421 = vadd.f32 %v336, %v420
    %v422 = vpop.f32.mrb[0].mxu0
    %v423 = vpop.f32.mrb[0].mxu0
    %v424 = vadd.f32 %v336, %v423
    %v425 = vpop.f32.mrb[0].mxu0
    %426 = vmatprep.mubr.bf16.mxu0 0
    %427 = vmatmul.mubr.bf16.gmra.mrb[0].mxu0 %v308
    %v428 = vpop.f32.mrb[0].mxu0
    %v429 = vadd.f32 %v336, %v428
    %v430 = vpop.f32.mrb[0].mxu0
    %v431 = vpop.f32.mrb[0].mxu0
    %v432 = vadd.f32 %v336, %v431
    %v433 = vpop.f32.mrb[0].mxu0
    %434 = vmatprep.mubr.bf16.mxu0 0
    %435 = vmatmul.mubr.bf16.gmra.mrb[0].mxu0 %v309
    %v436 = vpop.f32.mrb[0].mxu0
    %v437 = vadd.f32 %v336, %v436
    %v438 = vpop.f32.mrb[0].mxu0
    %v439 = vpop.f32.mrb[0].mxu0
    %v440 = vadd.f32 %v336, %v439
    %v441 = vpop.f32.mrb[0].mxu0
    %442 = vmatprep.mubr.bf16.mxu0 0
    %443 = vmatmul.mubr.bf16.gmra.mrb[0].mxu0 %v310
    %v444 = vpop.f32.mrb[0].mxu0
    %v445 = vadd.f32 %v336, %v444
    %v446 = vpop.f32.mrb[0].mxu0
    %v447 = vpop.f32.mrb[0].mxu0
    %v448 = vadd.f32 %v336, %v447
    %v449 = vpop.f32.mrb[0].mxu0
    %450 = vmatprep.mubr.bf16.mxu0 0
    %451 = vmatmul.mubr.bf16.gmra.mrb[0].mxu0 %v311
    %v452 = vpop.f32.mrb[0].mxu0
    %v453 = vadd.f32 %v336, %v452
    %v454 = vpop.f32.mrb[0].mxu0
    %v455 = vpop.f32.mrb[0].mxu0
    %v456 = vadd.f32 %v336, %v455
    %v457 = vpop.f32.mrb[0].mxu0
    %458 = vmatprep.mubr.bf16.mxu0 0
    %459 = vmatmul.mubr.bf16.gmra.mrb[0].mxu0 %v312
    %v460 = vpop.f32.mrb[0].mxu0
    %v461 = vadd.f32 %v336, %v460
    %v462 = vpop.f32.mrb[0].mxu0
    %v463 = vpop.f32.mrb[0].mxu0
    %v464 = vadd.f32 %v336, %v463
    %v465 = vpop.f32.mrb[0].mxu0
    %466 = vmatprep.mubr.bf16.mxu0 0
    %467 = vmatmul.mubr.bf16.gmra.mrb[0].mxu0 %v313
    %v468 = vpop.f32.mrb[0].mxu0
    %v469 = vadd.f32 %v336, %v468
    %v470 = vpop.f32.mrb[0].mxu0
    %v471 = vpop.f32.mrb[0].mxu0
    %v472 = vadd.f32 %v336, %v471
    %v473 = vpop.f32.mrb[0].mxu0
    %474 = vmatprep.mubr.bf16.mxu0 0
    %475 = vmatmul.mubr.bf16.gmra.mrb[0].mxu0 %v314
    %v476 = vpop.f32.mrb[0].mxu0
    %v477 = vadd.f32 %v336, %v476
    %v478 = vpop.f32.mrb[0].mxu0
    %v479 = vpop.f32.mrb[0].mxu0
    %v480 = vadd.f32 %v336, %v479
    %v481 = vpop.f32.mrb[0].mxu0
    %482 = vdwg.mxu0
    %v483 = vpack.c.bf16 %v424, %v421
    %v484 = vpack.c.bf16 %v432, %v429
    %v485 = vpack.c.bf16 %v440, %v437
    %v486 = vpack.c.bf16 %v448, %v445
    %v487 = vpack.c.bf16 %v456, %v453
    %v488 = vpack.c.bf16 %v464, %v461
    %v489 = vpack.c.bf16 %v472, %v469
    %v490 = vpack.c.bf16 %v480, %v477
    %v491 = vmul.bf16 %v483, 1036860877
    %v492 = vmul.bf16 %v484, 1036860877
    %v493 = vmul.bf16 %v485, 1036860877
    %v494 = vmul.bf16 %v486, 1036860877
    %v495 = vmul.bf16 %v487, 1036860877
    %v496 = vmul.bf16 %v488, 1036860877
    %v497 = vmul.bf16 %v489, 1036860877
    %v498 = vmul.bf16 %v490, 1036860877
    %v499 = vmax.bf16 %v483, %v491
    %v500 = vmax.bf16 %v484, %v492
    %v501 = vmax.bf16 %v485, %v493
    %v502 = vmax.bf16 %v486, %v494
    %v503 = vmax.bf16 %v487, %v495
    %v504 = vmax.bf16 %v488, %v496
    %v505 = vmax.bf16 %v489, %v497
    %v506 = vmax.bf16 %v490, %v498
    %v507 = vld [vmem:[#allocation2] sm:$0xf]
    %v508 = vld [vmem:[#allocation2 + $0x4] sm:$0xf]
    %v509 = vld [vmem:[#allocation2 + $0x8] sm:$0xf]
    %v510 = vld [vmem:[#allocation2 + $0xc] sm:$0xf]
    %v511 = vld [vmem:[#allocation2 + $0x10] sm:$0xf]
    %v512 = vld [vmem:[#allocation2 + $0x14] sm:$0xf]
    %v513 = vld [vmem:[#allocation2 + $0x18] sm:$0xf]
    %v514 = vld [vmem:[#allocation2 + $0x1c] sm:$0xf]
    %v515 = vld [vmem:[#allocation2 + $0x20] sm:$0xf]
    %v516 = vld [vmem:[#allocation2 + $0x24] sm:$0xf]
    %v517 = vld [vmem:[#allocation2 + $0x28] sm:$0xf]
    %v518 = vld [vmem:[#allocation2 + $0x2c] sm:$0xf]
    %v519 = vld [vmem:[#allocation2 + $0x30] sm:$0xf]
    %v520 = vld [vmem:[#allocation2 + $0x34] sm:$0xf]
    %v521 = vld [vmem:[#allocation2 + $0x38] sm:$0xf]
    %v522 = vld [vmem:[#allocation2 + $0x3c] sm:$0xf]
    %v523 = vld [vmem:[%s6] sm:$0x1]
    %v525 = vlaneseq
    %v526 = vshrl.u32 %v525, 7
    %v527 = vsub.s32 0, %v526
    %v528 = vrot.slane %v523, %v527
    %v546 = vunpack.c.l.b16 %v507
    %v547 = vunpack.c.l.b16 %v508
    %v548 = vunpack.c.l.b16 %v509
    %v549 = vunpack.c.l.b16 %v510
    %v550 = vunpack.c.l.b16 %v511
    %v551 = vunpack.c.l.b16 %v512
    %v552 = vunpack.c.l.b16 %v513
    %v553 = vunpack.c.l.b16 %v514
    %v554 = vunpack.c.l.b16 %v515
    %v555 = vunpack.c.l.b16 %v516
    %v556 = vunpack.c.l.b16 %v517
    %v557 = vunpack.c.l.b16 %v518
    %v558 = vunpack.c.l.b16 %v519
    %v559 = vunpack.c.l.b16 %v520
    %v560 = vunpack.c.l.b16 %v521
    %v561 = vunpack.c.l.b16 %v522
    %v562 = vpack.c.b16 %v547, %v546
    %v563 = vpack.c.b16 %v549, %v548
    %v564 = vpack.c.b16 %v551, %v550
    %v565 = vpack.c.b16 %v553, %v552
    %v566 = vpack.c.b16 %v555, %v554
    %v567 = vpack.c.b16 %v557, %v556
    %v568 = vpack.c.b16 %v559, %v558
    %v569 = vpack.c.b16 %v561, %v560
    %578 = vmatprep.subr.bf16.mxu0 0
    %579 = vmatpush1.bf16.msra.mxu0 %v562
    %580 = vmatprep.subr.bf16.mxu0 0
    %581 = vmatpush1.bf16.msra.mxu0 %v563
    %582 = vmatprep.subr.bf16.mxu0 0
    %583 = vmatpush1.bf16.msra.mxu0 %v564
    %584 = vmatprep.subr.bf16.mxu0 0
    %585 = vmatpush1.bf16.msra.mxu0 %v565
    %586 = vmatprep.subr.bf16.mxu0 0
    %587 = vmatpush1.bf16.msra.mxu0 %v566
    %588 = vmatprep.subr.bf16.mxu0 0
    %589 = vmatpush1.bf16.msra.mxu0 %v567
    %590 = vmatprep.subr.bf16.mxu0 0
    %591 = vmatpush1.bf16.msra.mxu0 %v568
    %592 = vmatprep.subr.bf16.mxu0 0
    %593 = vmatpush1.bf16.msra.mxu0 %v569
    %594 = vmatprep.subr.bf16.mxu0 0
    %595 = vmatpush1.bf16.msra.mxu0 0
    %596 = vmatprep.subr.bf16.mxu0 0
    %597 = vmatpush1.bf16.msra.mxu0 0
    %598 = vmatprep.subr.bf16.mxu0 0
    %599 = vmatpush1.bf16.msra.mxu0 0
    %600 = vmatprep.subr.bf16.mxu0 0
    %601 = vmatpush1.bf16.msra.mxu0 0
    %602 = vmatprep.subr.bf16.mxu0 0
    %603 = vmatpush1.bf16.msra.mxu0 0
    %604 = vmatprep.subr.bf16.mxu0 0
    %605 = vmatpush1.bf16.msra.mxu0 0
    %606 = vmatprep.subr.bf16.mxu0 0
    %607 = vmatpush1.bf16.msra.mxu0 0
    %608 = vmatprep.subr.bf16.mxu0 0
    %609 = vmatpush1.bf16.msra.mxu0 0
    %610 = vmatprep.mubr.bf16.mxu0 0
    %611 = vmatmul.mubr.bf16.gmra.mrb[0].mxu0 %v499
    %v612 = vpop.f32.mrb[0].mxu0
    %v613 = vadd.f32 %v528, %v612
    %v614 = vpop.f32.mrb[0].mxu0
    %v615 = vpop.f32.mrb[0].mxu0
    %v616 = vadd.f32 %v528, %v615
    %v617 = vpop.f32.mrb[0].mxu0
    %618 = vmatprep.mubr.bf16.mxu0 0
    %619 = vmatmul.mubr.bf16.gmra.mrb[0].mxu0 %v500
    %v620 = vpop.f32.mrb[0].mxu0
    %v621 = vadd.f32 %v528, %v620
    %v622 = vpop.f32.mrb[0].mxu0
    %v623 = vpop.f32.mrb[0].mxu0
    %v624 = vadd.f32 %v528, %v623
    %v625 = vpop.f32.mrb[0].mxu0
    %626 = vmatprep.mubr.bf16.mxu0 0
    %627 = vmatmul.mubr.bf16.gmra.mrb[0].mxu0 %v501
    %v628 = vpop.f32.mrb[0].mxu0
    %v629 = vadd.f32 %v528, %v628
    %v630 = vpop.f32.mrb[0].mxu0
    %v631 = vpop.f32.mrb[0].mxu0
    %v632 = vadd.f32 %v528, %v631
    %v633 = vpop.f32.mrb[0].mxu0
    %634 = vmatprep.mubr.bf16.mxu0 0
    %635 = vmatmul.mubr.bf16.gmra.mrb[0].mxu0 %v502
    %v636 = vpop.f32.mrb[0].mxu0
    %v637 = vadd.f32 %v528, %v636
    %v638 = vpop.f32.mrb[0].mxu0
    %v639 = vpop.f32.mrb[0].mxu0
    %v640 = vadd.f32 %v528, %v639
    %v641 = vpop.f32.mrb[0].mxu0
    %642 = vmatprep.mubr.bf16.mxu0 0
    %643 = vmatmul.mubr.bf16.gmra.mrb[0].mxu0 %v503
    %v644 = vpop.f32.mrb[0].mxu0
    %v645 = vadd.f32 %v528, %v644
    %v646 = vpop.f32.mrb[0].mxu0
    %v647 = vpop.f32.mrb[0].mxu0
    %v648 = vadd.f32 %v528, %v647
    %v649 = vpop.f32.mrb[0].mxu0
    %650 = vmatprep.mubr.bf16.mxu0 0
    %651 = vmatmul.mubr.bf16.gmra.mrb[0].mxu0 %v504
    %v652 = vpop.f32.mrb[0].mxu0
    %v653 = vadd.f32 %v528, %v652
    %v654 = vpop.f32.mrb[0].mxu0
    %v655 = vpop.f32.mrb[0].mxu0
    %v656 = vadd.f32 %v528, %v655
    %v657 = vpop.f32.mrb[0].mxu0
    %658 = vmatprep.mubr.bf16.mxu0 0
    %659 = vmatmul.mubr.bf16.gmra.mrb[0].mxu0 %v505
    %v660 = vpop.f32.mrb[0].mxu0
    %v661 = vadd.f32 %v528, %v660
    %v662 = vpop.f32.mrb[0].mxu0
    %v663 = vpop.f32.mrb[0].mxu0
    %v664 = vadd.f32 %v528, %v663
    %v665 = vpop.f32.mrb[0].mxu0
    %666 = vmatprep.mubr.bf16.mxu0 0
    %667 = vmatmul.mubr.bf16.gmra.mrb[0].mxu0 %v506
    %v668 = vpop.f32.mrb[0].mxu0
    %v669 = vadd.f32 %v528, %v668
    %v670 = vpop.f32.mrb[0].mxu0
    %v671 = vpop.f32.mrb[0].mxu0
    %v672 = vadd.f32 %v528, %v671
    %v673 = vpop.f32.mrb[0].mxu0
    %674 = vdwg.mxu0
    %v675 = vpack.c.bf16 %v616, %v613
    %v676 = vpack.c.bf16 %v624, %v621
    %v677 = vpack.c.bf16 %v632, %v629
    %v678 = vpack.c.bf16 %v640, %v637
    %v679 = vpack.c.bf16 %v648, %v645
    %v680 = vpack.c.bf16 %v656, %v653
    %v681 = vpack.c.bf16 %v664, %v661
    %v682 = vpack.c.bf16 %v672, %v669
    %v683 = vmul.bf16 %v675, 1036860877
    %v684 = vmul.bf16 %v676, 1036860877
    %v685 = vmul.bf16 %v677, 1036860877
    %v686 = vmul.bf16 %v678, 1036860877
    %v687 = vmul.bf16 %v679, 1036860877
    %v688 = vmul.bf16 %v680, 1036860877
    %v689 = vmul.bf16 %v681, 1036860877
    %v690 = vmul.bf16 %v682, 1036860877
    %v691 = vmax.bf16 %v675, %v683
    %v692 = vmax.bf16 %v676, %v684
    %v693 = vmax.bf16 %v677, %v685
    %v694 = vmax.bf16 %v678, %v686
    %v695 = vmax.bf16 %v679, %v687
    %v696 = vmax.bf16 %v680, %v688
    %v697 = vmax.bf16 %v681, %v689
    %v698 = vmax.bf16 %v682, %v690
    %v699 = vld [vmem:[#allocation5] sm:$0xf]
    %v700 = vld [vmem:[#allocation5 + $0x4] sm:$0xf]
    %v701 = vld [vmem:[#allocation5 + $0x8] sm:$0xf]
    %v702 = vld [vmem:[#allocation5 + $0xc] sm:$0xf]
    %v703 = vld [vmem:[#allocation5 + $0x10] sm:$0xf]
    %v704 = vld [vmem:[#allocation5 + $0x14] sm:$0xf]
    %v705 = vld [vmem:[#allocation5 + $0x18] sm:$0xf]
    %v706 = vld [vmem:[#allocation5 + $0x1c] sm:$0xf]
    %v707 = vld [vmem:[#allocation5 + $0x20] sm:$0xf]
    %v708 = vld [vmem:[#allocation5 + $0x24] sm:$0xf]
    %v709 = vld [vmem:[#allocation5 + $0x28] sm:$0xf]
    %v710 = vld [vmem:[#allocation5 + $0x2c] sm:$0xf]
    %v711 = vld [vmem:[#allocation5 + $0x30] sm:$0xf]
    %v712 = vld [vmem:[#allocation5 + $0x34] sm:$0xf]
    %v713 = vld [vmem:[#allocation5 + $0x38] sm:$0xf]
    %v714 = vld [vmem:[#allocation5 + $0x3c] sm:$0xf]
    %v715 = vld [vmem:[%s8] sm:$0x1]
    %v717 = vlaneseq
    %v718 = vshrl.u32 %v717, 7
    %v719 = vsub.s32 0, %v718
    %v720 = vrot.slane %v715, %v719
    %v738 = vunpack.c.l.b16 %v699
    %v739 = vunpack.c.l.b16 %v700
    %v740 = vunpack.c.l.b16 %v701
    %v741 = vunpack.c.l.b16 %v702
    %v742 = vunpack.c.l.b16 %v703
    %v743 = vunpack.c.l.b16 %v704
    %v744 = vunpack.c.l.b16 %v705
    %v745 = vunpack.c.l.b16 %v706
    %v746 = vunpack.c.l.b16 %v707
    %v747 = vunpack.c.l.b16 %v708
    %v748 = vunpack.c.l.b16 %v709
    %v749 = vunpack.c.l.b16 %v710
    %v750 = vunpack.c.l.b16 %v711
    %v751 = vunpack.c.l.b16 %v712
    %v752 = vunpack.c.l.b16 %v713
    %v753 = vunpack.c.l.b16 %v714
    %v754 = vpack.c.b16 %v739, %v738
    %v755 = vpack.c.b16 %v741, %v740
    %v756 = vpack.c.b16 %v743, %v742
    %v757 = vpack.c.b16 %v745, %v744
    %v758 = vpack.c.b16 %v747, %v746
    %v759 = vpack.c.b16 %v749, %v748
    %v760 = vpack.c.b16 %v751, %v750
    %v761 = vpack.c.b16 %v753, %v752
    %770 = vmatprep.subr.bf16.mxu0 0
    %771 = vmatpush1.bf16.msra.mxu0 %v754
    %772 = vmatprep.subr.bf16.mxu0 0
    %773 = vmatpush1.bf16.msra.mxu0 %v755
    %774 = vmatprep.subr.bf16.mxu0 0
    %775 = vmatpush1.bf16.msra.mxu0 %v756
    %776 = vmatprep.subr.bf16.mxu0 0
    %777 = vmatpush1.bf16.msra.mxu0 %v757
    %778 = vmatprep.subr.bf16.mxu0 0
    %779 = vmatpush1.bf16.msra.mxu0 %v758
    %780 = vmatprep.subr.bf16.mxu0 0
    %781 = vmatpush1.bf16.msra.mxu0 %v759
    %782 = vmatprep.subr.bf16.mxu0 0
    %783 = vmatpush1.bf16.msra.mxu0 %v760
    %784 = vmatprep.subr.bf16.mxu0 0
    %785 = vmatpush1.bf16.msra.mxu0 %v761
    %786 = vmatprep.subr.bf16.mxu0 0
    %787 = vmatpush1.bf16.msra.mxu0 0
    %788 = vmatprep.subr.bf16.mxu0 0
    %789 = vmatpush1.bf16.msra.mxu0 0
    %790 = vmatprep.subr.bf16.mxu0 0
    %791 = vmatpush1.bf16.msra.mxu0 0
    %792 = vmatprep.subr.bf16.mxu0 0
    %793 = vmatpush1.bf16.msra.mxu0 0
    %794 = vmatprep.subr.bf16.mxu0 0
    %795 = vmatpush1.bf16.msra.mxu0 0
    %796 = vmatprep.subr.bf16.mxu0 0
    %797 = vmatpush1.bf16.msra.mxu0 0
    %798 = vmatprep.subr.bf16.mxu0 0
    %799 = vmatpush1.bf16.msra.mxu0 0
    %800 = vmatprep.subr.bf16.mxu0 0
    %801 = vmatpush1.bf16.msra.mxu0 0
    %802 = vmatprep.mubr.bf16.mxu0 0
    %803 = vmatmul.mubr.bf16.gmra.mrb[0].mxu0 %v691
    %v804 = vpop.f32.mrb[0].mxu0
    %v805 = vadd.f32 %v720, %v804
    %v806 = vpop.f32.mrb[0].mxu0
    %v807 = vpop.f32.mrb[0].mxu0
    %v808 = vadd.f32 %v720, %v807
    %v809 = vpop.f32.mrb[0].mxu0
    %810 = vmatprep.mubr.bf16.mxu0 0
    %811 = vmatmul.mubr.bf16.gmra.mrb[0].mxu0 %v692
    %v812 = vpop.f32.mrb[0].mxu0
    %v813 = vadd.f32 %v720, %v812
    %v814 = vpop.f32.mrb[0].mxu0
    %v815 = vpop.f32.mrb[0].mxu0
    %v816 = vadd.f32 %v720, %v815
    %v817 = vpop.f32.mrb[0].mxu0
    %818 = vmatprep.mubr.bf16.mxu0 0
    %819 = vmatmul.mubr.bf16.gmra.mrb[0].mxu0 %v693
    %v820 = vpop.f32.mrb[0].mxu0
    %v821 = vadd.f32 %v720, %v820
    %v822 = vpop.f32.mrb[0].mxu0
    %v823 = vpop.f32.mrb[0].mxu0
    %v824 = vadd.f32 %v720, %v823
    %v825 = vpop.f32.mrb[0].mxu0
    %826 = vmatprep.mubr.bf16.mxu0 0
    %827 = vmatmul.mubr.bf16.gmra.mrb[0].mxu0 %v694
    %v828 = vpop.f32.mrb[0].mxu0
    %v829 = vadd.f32 %v720, %v828
    %v830 = vpop.f32.mrb[0].mxu0
    %v831 = vpop.f32.mrb[0].mxu0
    %v832 = vadd.f32 %v720, %v831
    %v833 = vpop.f32.mrb[0].mxu0
    %834 = vmatprep.mubr.bf16.mxu0 0
    %835 = vmatmul.mubr.bf16.gmra.mrb[0].mxu0 %v695
    %v836 = vpop.f32.mrb[0].mxu0
    %v837 = vadd.f32 %v720, %v836
    %v838 = vpop.f32.mrb[0].mxu0
    %v839 = vpop.f32.mrb[0].mxu0
    %v840 = vadd.f32 %v720, %v839
    %v841 = vpop.f32.mrb[0].mxu0
    %842 = vmatprep.mubr.bf16.mxu0 0
    %843 = vmatmul.mubr.bf16.gmra.mrb[0].mxu0 %v696
    %v844 = vpop.f32.mrb[0].mxu0
    %v845 = vadd.f32 %v720, %v844
    %v846 = vpop.f32.mrb[0].mxu0
    %v847 = vpop.f32.mrb[0].mxu0
    %v848 = vadd.f32 %v720, %v847
    %v849 = vpop.f32.mrb[0].mxu0
    %850 = vmatprep.mubr.bf16.mxu0 0
    %851 = vmatmul.mubr.bf16.gmra.mrb[0].mxu0 %v697
    %v852 = vpop.f32.mrb[0].mxu0
    %v853 = vadd.f32 %v720, %v852
    %v854 = vpop.f32.mrb[0].mxu0
    %v855 = vpop.f32.mrb[0].mxu0
    %v856 = vadd.f32 %v720, %v855
    %v857 = vpop.f32.mrb[0].mxu0
    %858 = vmatprep.mubr.bf16.mxu0 0
    %859 = vmatmul.mubr.bf16.gmra.mrb[0].mxu0 %v698
    %v860 = vpop.f32.mrb[0].mxu0
    %v861 = vadd.f32 %v720, %v860
    %v862 = vpop.f32.mrb[0].mxu0
    %v863 = vpop.f32.mrb[0].mxu0
    %v864 = vadd.f32 %v720, %v863
    %v865 = vpop.f32.mrb[0].mxu0
    %866 = vdwg.mxu0
    %v867 = vmul.f32 %v805, 0.1
    %v868 = vmul.f32 %v808, 0.1
    %v869 = vmul.f32 %v813, 0.1
    %v870 = vmul.f32 %v816, 0.1
    %v871 = vmul.f32 %v821, 0.1
    %v872 = vmul.f32 %v824, 0.1
    %v873 = vmul.f32 %v829, 0.1
    %v874 = vmul.f32 %v832, 0.1
    %v875 = vmul.f32 %v837, 0.1
    %v876 = vmul.f32 %v840, 0.1
    %v877 = vmul.f32 %v845, 0.1
    %v878 = vmul.f32 %v848, 0.1
    %v879 = vmul.f32 %v853, 0.1
    %v880 = vmul.f32 %v856, 0.1
    %v881 = vmul.f32 %v861, 0.1
    %v882 = vmul.f32 %v864, 0.1
    %v883 = vmax.f32 %v805, %v867
    %v884 = vmax.f32 %v808, %v868
    %v885 = vmax.f32 %v813, %v869
    %v886 = vmax.f32 %v816, %v870
    %v887 = vmax.f32 %v821, %v871
    %v888 = vmax.f32 %v824, %v872
    %v889 = vmax.f32 %v829, %v873
    %v890 = vmax.f32 %v832, %v874
    %v891 = vmax.f32 %v837, %v875
    %v892 = vmax.f32 %v840, %v876
    %v893 = vmax.f32 %v845, %v877
    %v894 = vmax.f32 %v848, %v878
    %v895 = vmax.f32 %v853, %v879
    %v896 = vmax.f32 %v856, %v880
    %v897 = vmax.f32 %v861, %v881
    %v898 = vmax.f32 %v864, %v882
    %v899 = vadd.f32 %v883, %v884
    %v900 = vadd.f32 %v899, %v885
    %v901 = vadd.f32 %v900, %v886
    %v902 = vadd.f32 %v901, %v887
    %v903 = vadd.f32 %v902, %v888
    %v904 = vadd.f32 %v903, %v889
    %v905 = vadd.f32 %v904, %v890
    %v906 = vrot.slane %v905, 4
    %v907 = vadd.f32 %v905, %v906
    %v908 = vrot.slane %v907, 2
    %v909 = vadd.f32 %v907, %v908
    %v910 = vrot.slane %v909, 1
    %v911 = vadd.f32 %v909, %v910
    %v912 = vadd.f32 %v891, %v892
    %v913 = vadd.f32 %v912, %v893
    %v914 = vadd.f32 %v913, %v894
    %v915 = vadd.f32 %v914, %v895
    %v916 = vadd.f32 %v915, %v896
    %v917 = vadd.f32 %v916, %v897
    %v918 = vadd.f32 %v917, %v898
    %v919 = vrot.slane %v918, 4
    %v920 = vadd.f32 %v918, %v919
    %v921 = vrot.slane %v920, 2
    %v922 = vadd.f32 %v920, %v921
    %v923 = vrot.slane %v922, 1
    %v924 = vadd.f32 %v922, %v923
    %v925 = vld [vmem:[#allocation7] sm:$0xff]
    %v926 = vld [vmem:[#allocation7 + $0x8] sm:$0xff]
    %v927 = vld [vmem:[#allocation7 + $0x10] sm:$0xff]
    %v928 = vld [vmem:[#allocation7 + $0x18] sm:$0xff]
    %v929 = vld [vmem:[#allocation7 + $0x20] sm:$0xff]
    %v930 = vld [vmem:[#allocation7 + $0x28] sm:$0xff]
    %v931 = vld [vmem:[#allocation7 + $0x30] sm:$0xff]
    %v932 = vld [vmem:[#allocation7 + $0x38] sm:$0xff]
    %v933 = vld [vmem:[#allocation7 + $0x40] sm:$0xff]
    %v934 = vld [vmem:[#allocation7 + $0x48] sm:$0xff]
    %v935 = vld [vmem:[#allocation7 + $0x50] sm:$0xff]
    %v936 = vld [vmem:[#allocation7 + $0x58] sm:$0xff]
    %v937 = vld [vmem:[#allocation7 + $0x60] sm:$0xff]
    %v938 = vld [vmem:[#allocation7 + $0x68] sm:$0xff]
    %v939 = vld [vmem:[#allocation7 + $0x70] sm:$0xff]
    %v940 = vld [vmem:[#allocation7 + $0x78] sm:$0xff]
    %v941 = vld [vmem:[%s10] sm:$0x1]
    %v943 = vlaneseq
    %v944 = vshrl.u32 %v943, 7
    %v945 = vsub.s32 0, %v944
    %v946 = vrot.slane %v941, %v945
    %vm950 = vcmask 1041409
    %v951 = vsel %vm950, %v924, %v911
    %953 = vmatprep.subr.mxu0 0.0
    %954 = vmatpush1.msra.mxu0 %v925
    %955 = vmatprep.subr.mxu0 0.0
    %956 = vmatpush1.msra.mxu0 %v926
    %957 = vmatprep.subr.mxu0 0.0
    %958 = vmatpush1.msra.mxu0 %v927
    %959 = vmatprep.subr.mxu0 0.0
    %960 = vmatpush1.msra.mxu0 %v928
    %961 = vmatprep.subr.mxu0 0.0
    %962 = vmatpush1.msra.mxu0 %v929
    %963 = vmatprep.subr.mxu0 0.0
    %964 = vmatpush1.msra.mxu0 %v930
    %965 = vmatprep.subr.mxu0 0.0
    %966 = vmatpush1.msra.mxu0 %v931
    %967 = vmatprep.subr.mxu0 0.0
    %968 = vmatpush1.msra.mxu0 %v932
    %969 = vmatprep.subr.mxu0 0.0
    %970 = vmatpush1.msra.mxu0 %v933
    %971 = vmatprep.subr.mxu0 0.0
    %972 = vmatpush1.msra.mxu0 %v934
    %973 = vmatprep.subr.mxu0 0.0
    %974 = vmatpush1.msra.mxu0 %v935
    %975 = vmatprep.subr.mxu0 0.0
    %976 = vmatpush1.msra.mxu0 %v936
    %977 = vmatprep.subr.mxu0 0.0
    %978 = vmatpush1.msra.mxu0 %v937
    %979 = vmatprep.subr.mxu0 0.0
    %980 = vmatpush1.msra.mxu0 %v938
    %981 = vmatprep.subr.mxu0 0.0
    %982 = vmatpush1.msra.mxu0 %v939
    %983 = vmatprep.subr.mxu0 0.0
    %984 = vmatpush1.msra.mxu0 %v940
    %985 = vmatprep.subr.mxu0 0.0
    %986 = vmatpush1.msra.mxu0 0.0
    %987 = vmatprep.subr.mxu0 0.0
    %988 = vmatpush1.msra.mxu0 0.0
    %989 = vmatprep.subr.mxu0 0.0
    %990 = vmatpush1.msra.mxu0 0.0
    %991 = vmatprep.subr.mxu0 0.0
    %992 = vmatpush1.msra.mxu0 0.0
    %993 = vmatprep.subr.mxu0 0.0
    %994 = vmatpush1.msra.mxu0 0.0
    %995 = vmatprep.subr.mxu0 0.0
    %996 = vmatpush1.msra.mxu0 0.0
    %997 = vmatprep.subr.mxu0 0.0
    %998 = vmatpush1.msra.mxu0 0.0
    %999 = vmatprep.subr.mxu0 0.0
    %1000 = vmatpush1.msra.mxu0 0.0
    %1001 = vmatprep.subr.mxu0 0.0
    %1002 = vmatpush1.msra.mxu0 0.0
    %1003 = vmatprep.subr.mxu0 0.0
    %1004 = vmatpush1.msra.mxu0 0.0
    %1005 = vmatprep.subr.mxu0 0.0
    %1006 = vmatpush1.msra.mxu0 0.0
    %1007 = vmatprep.subr.mxu0 0.0
    %1008 = vmatpush1.msra.mxu0 0.0
    %1009 = vmatprep.subr.mxu0 0.0
    %1010 = vmatpush1.msra.mxu0 0.0
    %1011 = vmatprep.subr.mxu0 0.0
    %1012 = vmatpush1.msra.mxu0 0.0
    %1013 = vmatprep.subr.mxu0 0.0
    %1014 = vmatpush1.msra.mxu0 0.0
    %1015 = vmatprep.subr.mxu0 0.0
    %1016 = vmatpush1.msra.mxu0 0.0
    %1017 = vmatprep.mubr.f32.mxu0 0.0
    %1018 = vmatmul.mubr.f32.gmra.mrb[0].mxu0 %v951
    %v1019 = vpop.f32.mrb[0].mxu0
    %v1020 = vadd.f32 %v946, %v1019
    %v1021 = vpop.f32.mrb[0].mxu0
    %1022 = vdwg.mxu0
    %1023 = vst [vmem:[#allocation8] sm:$0x3] %v1020
    // Predicated region
    $region58: #{tpu_custom_call.1} parent=1 // pred_check
      _
    $region59: #{tpu_custom_call.1} parent=1 // pred_check_branch
      %1025 = sbr.rel (0) target = $region61
    $region60: #{tpu_custom_call.1} parent=1 // pred_region
      %s1027 = ssub.s32 32, 32
      %1028 = vsyncadd [#allocation4], %s1027
      %s1030 = sshll.u32 [#allocation8], 4
      %s1031 = int_to_ptr.vmem [resolvable:$true] %s1030
      %1033 = dma.vmem_to_hbm [thread:$0]  %s1031, 32, %s11, [#allocation4]
    $region61: #{tpu_custom_call.1} parent=1 // pred_fallthru
      _
    // Predicated region
    $region62: #{tpu_custom_call.1} parent=1 // pred_check
      _
    $region63: #{tpu_custom_call.1} parent=1 // pred_check_branch
      %1035 = sbr.rel (0) target = $region65
    $region64: #{tpu_custom_call.1} parent=1 // pred_region
      %1036 = dma.done [#allocation4], 32
    $region65: #{tpu_custom_call.1} parent=1 // pred_fallthru
      _
    %1037 = vsyncpa [#allocation3], 1
    %1038 = vsyncpa [#allocation6], 1
    %1039 = vsyncpa [#allocation4], 1

</llo_original>
